<compile_context>
chip_gen: v5e
topology: v5e:2x2
jax: 0.10.0
libtpu: 0.0.40
codegen_flags: <defaults>
</compile_context>

<pallas_src>
import functools

import jax
import jax.numpy as jnp
import numpy as np
from jax.experimental import pallas as pl
from jax.experimental.pallas import tpu as pltpu

LANE = 128            # pixels per lane row
MAX_SUBLANES = 1024   # max sublane rows per block (3*1024*128*4B = 1.5 MiB/buffer)

# Compile-time reciprocals (avoid divides)
_INV_1055 = 1.0 / 1.055
_INV_1292 = 1.0 / 12.92
_INV_XN = 1.0 / 0.95047
_INV_ZN = 1.0 / 1.08883
_INV_100 = 1.0 / 100.0
_INV_255 = 1.0 / 255.0
_LAB_THR = 0.008856
_THIRD = 1.0 / 3.0


# ---------------------------------------------------------------------------
# Elementwise math (VPU + EUP), operating on (S, 128) channel slabs
# ---------------------------------------------------------------------------
def _srgb_to_linear(c):
    # kornia.color.rgb_to_linear_rgb
    # TODO(synk): the x^2.4 gamma / cube root could use polynomial
    # approximations to offload the single EUP slot onto the VALUs; kept exact
    # to match kornia numerics.
    return jnp.where(c > 0.04045,
                     jnp.power((c + 0.055) * _INV_1055, 2.4),
                     c * _INV_1292)


def _rgb_to_lab_norm(r, g, b):
    """r,g,b in [0,1] -> (L/100, (a+128)/255, (b+128)/255), kornia rgb_to_lab."""
    r = _srgb_to_linear(r)
    g = _srgb_to_linear(g)
    b = _srgb_to_linear(b)

    # kornia.color.rgb_to_xyz
    x = 0.412453 * r + 0.357580 * g + 0.180423 * b
    y = 0.212671 * r + 0.715160 * g + 0.072169 * b
    z = 0.019334 * r + 0.119193 * g + 0.950227 * b

    # D65 reference white
    xn = x * _INV_XN
    yn = y
    zn = z * _INV_ZN

    def f(t):
        power = jnp.power(jnp.maximum(t, _LAB_THR), _THIRD)
        scale = 7.787 * t + 4.0 / 29.0
        return jnp.where(t > _LAB_THR, power, scale)

    fx, fy, fz = f(xn), f(yn), f(zn)

    L = 116.0 * fy - 16.0
    A = 500.0 * (fx - fy)
    B = 200.0 * (fy - fz)

    return L * _INV_100, (A + 128.0) * _INV_255, (B + 128.0) * _INV_255


# ---------------------------------------------------------------------------
# Pallas kernel
#   pred_ref, gt_ref : (3, S, 128) f32 RGB block (one batch image, S pixel rows)
#   out_ref          : (3, 8, 128) f32 per-batch partial-sum accumulator
# ---------------------------------------------------------------------------
def lab_loss_kernel(pred_ref, gt_ref, out_ref):
    i = pl.program_id(1)

    @pl.when(i == 0)
    def _():
        out_ref[...] = jnp.zeros_like(out_ref)

    p = pred_ref[...]          # (3, S, 128)
    g = gt_ref[...]

    pL, pA, pB = _rgb_to_lab_norm(p[0], p[1], p[2])
    gL, gA, gB = _rgb_to_lab_norm(g[0], g[1], g[2])

    s = p.shape[1]             # static block sublane count (multiple of 8)

    def fold(d):
        # (S,128) squared diff -> (8,128) partial sums via cross-vreg VALU adds
        dsq = d * d
        if s == 8:
            return dsq
        return jnp.sum(dsq.reshape(s // 8, 8, LANE), axis=0)

    out_ref[0, :, :] = out_ref[0, :, :] + fold(pL - gL)
    out_ref[1, :, :] = out_ref[1, :, :] + fold(pA - gA)
    out_ref[2, :, :] = out_ref[2, :, :] + fold(pB - gB)


# ---------------------------------------------------------------------------
# Wrapper: layout (free reshapes + optional zero-pad), final reduce + weighting
# ---------------------------------------------------------------------------
@functools.partial(jax.jit, static_argnames=("l_weight", "ab_weight"))
def lab_loss(pred, gt, l_weight=1.0, ab_weight=1.0):
    B, C, H, W = pred.shape
    assert C == 3
    hw = H * W
    n = B * hw

    # NCHW -> (B, 3, H*W): contiguous (free) reshape, no transpose pass.
    pred3 = pred.reshape(B, 3, hw).astype(jnp.float32)
    gt3 = gt.reshape(B, 3, hw).astype(jnp.float32)

    rows = pl.cdiv(hw, LANE)                 # pixel rows of 128 lanes
    chunks = pl.cdiv(rows, MAX_SUBLANES)     # number of chunks per image
    s = ((pl.cdiv(rows, chunks) + 7) // 8) * 8   # even split, mult of 8, <= MAX
    rows_pad = chunks * s
    hw_pad = rows_pad * LANE

    if hw_pad != hw:
        # identical zero padding on pred & gt -> identical LAB -> zero diff;
        # the final divide uses the unpadded n.
        pad = ((0, 0), (0, 0), (0, hw_pad - hw))
        pred3 = jnp.pad(pred3, pad)
        gt3 = jnp.pad(gt3, pad)

    pred4 = pred3.reshape(B, 3, rows_pad, LANE)
    gt4 = gt3.reshape(B, 3, rows_pad, LANE)

    in_spec = pl.BlockSpec((pl.Squeezed(), 3, s, LANE), lambda b, i: (b, 0, i, 0))
    out_spec = pl.BlockSpec((pl.Squeezed(), 3, 8, LANE), lambda b, i: (b, 0, 0, 0))

    partials = pl.pallas_call(
        lab_loss_kernel,
        out_shape=jax.ShapeDtypeStruct((B, 3, 8, LANE), jnp.float32),
        grid_spec=pltpu.PrefetchScalarGridSpec(
            num_scalar_prefetch=0,
            grid=(B, chunks),
            in_specs=[in_spec, in_spec],
            out_specs=out_spec,
        ),
        compiler_params=pltpu.CompilerParams(
            dimension_semantics=("parallel", "arbitrary"),
            vmem_limit_bytes=32 * 1024 * 1024),
    )(pred4, gt4)

    sums = jnp.sum(partials, axis=(0, 2, 3))      # (3,) channel sums of sq-diff
    inv_n = 1.0 / n
    loss_l = sums[0] * inv_n
    loss_a = sums[1] * inv_n
    loss_b = sums[2] * inv_n
    return l_weight * loss_l + ab_weight * (loss_a + loss_b) * 0.5


# ---------------------------------------------------------------------------
# Pure-JAX reference (identical math) for a correctness check
# ---------------------------------------------------------------------------
def _lab_loss_ref(pred, gt, l_weight=1.0, ab_weight=1.0):
    def to_lab(img):
        img = img.astype(jnp.float32)
        return _rgb_to_lab_norm(img[:, 0], img[:, 1], img[:, 2])

    pL, pA, pB = to_lab(pred)
    gL, gA, gB = to_lab(gt)
    mL = jnp.mean((pL - gL) ** 2)
    mA = jnp.mean((pA - gA) ** 2)
    mB = jnp.mean((pB - gB) ** 2)
    return l_weight * mL + ab_weight * (mA + mB) / 2.0


if __name__ == "__main__":
    key = jax.random.PRNGKey(0)
    k1, k2 = jax.random.split(key)
    B, C, H, W = 2, 3, 16, 16  # NCHW, RGB in [0, 1]
    pred = jax.random.uniform(k1, (B, C, H, W), dtype=jnp.float32)
    gt = jax.random.uniform(k2, (B, C, H, W), dtype=jnp.float32)

    out = lab_loss(pred, gt, l_weight=1.0, ab_weight=1.0)
    out = jax.block_until_ready(out)

    ref = _lab_loss_ref(pred, gt, 1.0, 1.0)
    np.testing.assert_allclose(np.asarray(out), np.asarray(ref),
                               rtol=1e-4, atol=1e-6)
    print("KERNEL_OK")
</pallas_src>

<mosaic_0001>
module attributes {stable_mosaic.version = 11 : i64} {
  func.func @lab_loss_kernel(%arg0: i32, %arg1: i32, %arg2: memref<1x3x8x128xf32, #tpu.memory_space<vmem>>, %arg3: memref<1x3x8x128xf32, #tpu.memory_space<vmem>>, %arg4: memref<1x3x8x128xf32, #tpu.memory_space<vmem>>) attributes {dimension_semantics = [#tpu.dimension_semantics<parallel>, #tpu.dimension_semantics<arbitrary>], iteration_bounds = array<i64: 2, 1>, scalar_prefetch = 0 : i64, scratch_operands = 0 : i64, tpu.core_type = #tpu.core_type<tc>, window_params = [{transform_indices = @transform_0, window_bounds = array<i64: 1, 3, 8, 128>}, {transform_indices = @transform_1, window_bounds = array<i64: 1, 3, 8, 128>}, {transform_indices = @transform_2, window_bounds = array<i64: 1, 3, 8, 128>}]} {
    %c0_i32 = arith.constant 0 : i32
    %0 = arith.cmpi eq, %arg1, %c0_i32 : i32
    %1 = arith.extui %0 : i1 to i32
    %c0_i32_0 = arith.constant 0 : i32
    %2 = arith.cmpi ne, %1, %c0_i32_0 : i32
    scf.if %2 {
      %cst_129 = arith.constant 0.000000e+00 : f32
      %271 = vector.broadcast %cst_129 : f32 to vector<3x8x128xf32>
      %c0_130 = arith.constant 0 : index
      %c0_131 = arith.constant 0 : index
      %c0_132 = arith.constant 0 : index
      %c0_133 = arith.constant 0 : index
      %272 = vector.load %arg4[%c0_130, %c0_131, %c0_132, %c0_133] : memref<1x3x8x128xf32, #tpu.memory_space<vmem>>, vector<1x3x8x128xf32>
      %273 = vector.shape_cast %272 : vector<1x3x8x128xf32> to vector<3x8x128xf32>
      %274 = vector.shape_cast %271 : vector<3x8x128xf32> to vector<1x3x8x128xf32>
      tpu.vector_store %arg4[%c0_130, %c0_131, %c0_132, %c0_133], %274 {strides = array<i32>} : memref<1x3x8x128xf32, #tpu.memory_space<vmem>>, vector<1x3x8x128xf32>,
    } else {
    }
    %c0 = arith.constant 0 : index
    %c0_1 = arith.constant 0 : index
    %c0_2 = arith.constant 0 : index
    %c0_3 = arith.constant 0 : index
    %3 = vector.load %arg2[%c0, %c0_1, %c0_2, %c0_3] : memref<1x3x8x128xf32, #tpu.memory_space<vmem>>, vector<1x3x8x128xf32>
    %4 = vector.shape_cast %3 : vector<1x3x8x128xf32> to vector<3x8x128xf32>
    %c0_4 = arith.constant 0 : index
    %c0_5 = arith.constant 0 : index
    %c0_6 = arith.constant 0 : index
    %c0_7 = arith.constant 0 : index
    %5 = vector.load %arg3[%c0_4, %c0_5, %c0_6, %c0_7] : memref<1x3x8x128xf32, #tpu.memory_space<vmem>>, vector<1x3x8x128xf32>
    %6 = vector.shape_cast %5 : vector<1x3x8x128xf32> to vector<3x8x128xf32>
    %7 = vector.extract_strided_slice %4 {offsets = [0, 0, 0], sizes = [1, 8, 128], strides = [1, 1, 1]} : vector<3x8x128xf32> to vector<1x8x128xf32>
    %8 = vector.shape_cast %7 : vector<1x8x128xf32> to vector<8x128xf32>
    %9 = vector.extract_strided_slice %4 {offsets = [1, 0, 0], sizes = [1, 8, 128], strides = [1, 1, 1]} : vector<3x8x128xf32> to vector<1x8x128xf32>
    %10 = vector.shape_cast %9 : vector<1x8x128xf32> to vector<8x128xf32>
    %11 = vector.extract_strided_slice %4 {offsets = [2, 0, 0], sizes = [1, 8, 128], strides = [1, 1, 1]} : vector<3x8x128xf32> to vector<1x8x128xf32>
    %12 = vector.shape_cast %11 : vector<1x8x128xf32> to vector<8x128xf32>
    %cst = arith.constant 4.045000e-02 : f32
    %13 = vector.broadcast %cst : f32 to vector<8x128xf32>
    %14 = arith.cmpf ogt, %8, %13 : vector<8x128xf32>
    %cst_8 = arith.constant 5.500000e-02 : f32
    %15 = vector.broadcast %cst_8 : f32 to vector<8x128xf32>
    %16 = arith.addf %8, %15 : vector<8x128xf32>
    %cst_9 = arith.constant 0.947867274 : f32
    %17 = vector.broadcast %cst_9 : f32 to vector<8x128xf32>
    %18 = arith.mulf %16, %17 : vector<8x128xf32>
    %cst_10 = arith.constant 2.400000e+00 : f32
    %19 = vector.broadcast %cst_10 : f32 to vector<8x128xf32>
    %20 = math.powf %18, %19 : vector<8x128xf32>
    %cst_11 = arith.constant 0.0773993805 : f32
    %21 = vector.broadcast %cst_11 : f32 to vector<8x128xf32>
    %22 = arith.mulf %8, %21 : vector<8x128xf32>
    %23 = arith.select %14, %20, %22 : vector<8x128xi1>, vector<8x128xf32>
    %cst_12 = arith.constant 4.045000e-02 : f32
    %24 = vector.broadcast %cst_12 : f32 to vector<8x128xf32>
    %25 = arith.cmpf ogt, %10, %24 : vector<8x128xf32>
    %cst_13 = arith.constant 5.500000e-02 : f32
    %26 = vector.broadcast %cst_13 : f32 to vector<8x128xf32>
    %27 = arith.addf %10, %26 : vector<8x128xf32>
    %cst_14 = arith.constant 0.947867274 : f32
    %28 = vector.broadcast %cst_14 : f32 to vector<8x128xf32>
    %29 = arith.mulf %27, %28 : vector<8x128xf32>
    %cst_15 = arith.constant 2.400000e+00 : f32
    %30 = vector.broadcast %cst_15 : f32 to vector<8x128xf32>
    %31 = math.powf %29, %30 : vector<8x128xf32>
    %cst_16 = arith.constant 0.0773993805 : f32
    %32 = vector.broadcast %cst_16 : f32 to vector<8x128xf32>
    %33 = arith.mulf %10, %32 : vector<8x128xf32>
    %34 = arith.select %25, %31, %33 : vector<8x128xi1>, vector<8x128xf32>
    %cst_17 = arith.constant 4.045000e-02 : f32
    %35 = vector.broadcast %cst_17 : f32 to vector<8x128xf32>
    %36 = arith.cmpf ogt, %12, %35 : vector<8x128xf32>
    %cst_18 = arith.constant 5.500000e-02 : f32
    %37 = vector.broadcast %cst_18 : f32 to vector<8x128xf32>
    %38 = arith.addf %12, %37 : vector<8x128xf32>
    %cst_19 = arith.constant 0.947867274 : f32
    %39 = vector.broadcast %cst_19 : f32 to vector<8x128xf32>
    %40 = arith.mulf %38, %39 : vector<8x128xf32>
    %cst_20 = arith.constant 2.400000e+00 : f32
    %41 = vector.broadcast %cst_20 : f32 to vector<8x128xf32>
    %42 = math.powf %40, %41 : vector<8x128xf32>
    %cst_21 = arith.constant 0.0773993805 : f32
    %43 = vector.broadcast %cst_21 : f32 to vector<8x128xf32>
    %44 = arith.mulf %12, %43 : vector<8x128xf32>
    %45 = arith.select %36, %42, %44 : vector<8x128xi1>, vector<8x128xf32>
    %cst_22 = arith.constant 4.124530e-01 : f32
    %46 = vector.broadcast %cst_22 : f32 to vector<8x128xf32>
    %47 = arith.mulf %46, %23 : vector<8x128xf32>
    %cst_23 = arith.constant 3.575800e-01 : f32
    %48 = vector.broadcast %cst_23 : f32 to vector<8x128xf32>
    %49 = arith.mulf %48, %34 : vector<8x128xf32>
    %50 = arith.addf %47, %49 : vector<8x128xf32>
    %cst_24 = arith.constant 1.804230e-01 : f32
    %51 = vector.broadcast %cst_24 : f32 to vector<8x128xf32>
    %52 = arith.mulf %51, %45 : vector<8x128xf32>
    %53 = arith.addf %50, %52 : vector<8x128xf32>
    %cst_25 = arith.constant 2.126710e-01 : f32
    %54 = vector.broadcast %cst_25 : f32 to vector<8x128xf32>
    %55 = arith.mulf %54, %23 : vector<8x128xf32>
    %cst_26 = arith.constant 7.151600e-01 : f32
    %56 = vector.broadcast %cst_26 : f32 to vector<8x128xf32>
    %57 = arith.mulf %56, %34 : vector<8x128xf32>
    %58 = arith.addf %55, %57 : vector<8x128xf32>
    %cst_27 = arith.constant 7.216900e-02 : f32
    %59 = vector.broadcast %cst_27 : f32 to vector<8x128xf32>
    %60 = arith.mulf %59, %45 : vector<8x128xf32>
    %61 = arith.addf %58, %60 : vector<8x128xf32>
    %cst_28 = arith.constant 1.933400e-02 : f32
    %62 = vector.broadcast %cst_28 : f32 to vector<8x128xf32>
    %63 = arith.mulf %62, %23 : vector<8x128xf32>
    %cst_29 = arith.constant 1.191930e-01 : f32
    %64 = vector.broadcast %cst_29 : f32 to vector<8x128xf32>
    %65 = arith.mulf %64, %34 : vector<8x128xf32>
    %66 = arith.addf %63, %65 : vector<8x128xf32>
    %cst_30 = arith.constant 9.502270e-01 : f32
    %67 = vector.broadcast %cst_30 : f32 to vector<8x128xf32>
    %68 = arith.mulf %67, %45 : vector<8x128xf32>
    %69 = arith.addf %66, %68 : vector<8x128xf32>
    %cst_31 = arith.constant 1.05211103 : f32
    %70 = vector.broadcast %cst_31 : f32 to vector<8x128xf32>
    %71 = arith.mulf %53, %70 : vector<8x128xf32>
    %cst_32 = arith.constant 0.918417036 : f32
    %72 = vector.broadcast %cst_32 : f32 to vector<8x128xf32>
    %73 = arith.mulf %69, %72 : vector<8x128xf32>
    %cst_33 = arith.constant 8.856000e-03 : f32
    %74 = vector.broadcast %cst_33 : f32 to vector<8x128xf32>
    %75 = arith.maximumf %71, %74 : vector<8x128xf32>
    %cst_34 = arith.constant 0.333333343 : f32
    %76 = vector.broadcast %cst_34 : f32 to vector<8x128xf32>
    %77 = math.powf %75, %76 : vector<8x128xf32>
    %cst_35 = arith.constant 7.787000e+00 : f32
    %78 = vector.broadcast %cst_35 : f32 to vector<8x128xf32>
    %79 = arith.mulf %78, %71 : vector<8x128xf32>
    %cst_36 = arith.constant 0.137931034 : f32
    %80 = vector.broadcast %cst_36 : f32 to vector<8x128xf32>
    %81 = arith.addf %79, %80 : vector<8x128xf32>
    %cst_37 = arith.constant 8.856000e-03 : f32
    %82 = vector.broadcast %cst_37 : f32 to vector<8x128xf32>
    %83 = arith.cmpf ogt, %71, %82 : vector<8x128xf32>
    %84 = arith.select %83, %77, %81 : vector<8x128xi1>, vector<8x128xf32>
    %cst_38 = arith.constant 8.856000e-03 : f32
    %85 = vector.broadcast %cst_38 : f32 to vector<8x128xf32>
    %86 = arith.maximumf %61, %85 : vector<8x128xf32>
    %cst_39 = arith.constant 0.333333343 : f32
    %87 = vector.broadcast %cst_39 : f32 to vector<8x128xf32>
    %88 = math.powf %86, %87 : vector<8x128xf32>
    %cst_40 = arith.constant 7.787000e+00 : f32
    %89 = vector.broadcast %cst_40 : f32 to vector<8x128xf32>
    %90 = arith.mulf %89, %61 : vector<8x128xf32>
    %cst_41 = arith.constant 0.137931034 : f32
    %91 = vector.broadcast %cst_41 : f32 to vector<8x128xf32>
    %92 = arith.addf %90, %91 : vector<8x128xf32>
    %cst_42 = arith.constant 8.856000e-03 : f32
    %93 = vector.broadcast %cst_42 : f32 to vector<8x128xf32>
    %94 = arith.cmpf ogt, %61, %93 : vector<8x128xf32>
    %95 = arith.select %94, %88, %92 : vector<8x128xi1>, vector<8x128xf32>
    %cst_43 = arith.constant 8.856000e-03 : f32
    %96 = vector.broadcast %cst_43 : f32 to vector<8x128xf32>
    %97 = arith.maximumf %73, %96 : vector<8x128xf32>
    %cst_44 = arith.constant 0.333333343 : f32
    %98 = vector.broadcast %cst_44 : f32 to vector<8x128xf32>
    %99 = math.powf %97, %98 : vector<8x128xf32>
    %cst_45 = arith.constant 7.787000e+00 : f32
    %100 = vector.broadcast %cst_45 : f32 to vector<8x128xf32>
    %101 = arith.mulf %100, %73 : vector<8x128xf32>
    %cst_46 = arith.constant 0.137931034 : f32
    %102 = vector.broadcast %cst_46 : f32 to vector<8x128xf32>
    %103 = arith.addf %101, %102 : vector<8x128xf32>
    %cst_47 = arith.constant 8.856000e-03 : f32
    %104 = vector.broadcast %cst_47 : f32 to vector<8x128xf32>
    %105 = arith.cmpf ogt, %73, %104 : vector<8x128xf32>
    %106 = arith.select %105, %99, %103 : vector<8x128xi1>, vector<8x128xf32>
    %cst_48 = arith.constant 1.160000e+02 : f32
    %107 = vector.broadcast %cst_48 : f32 to vector<8x128xf32>
    %108 = arith.mulf %107, %95 : vector<8x128xf32>
    %cst_49 = arith.constant 1.600000e+01 : f32
    %109 = vector.broadcast %cst_49 : f32 to vector<8x128xf32>
    %110 = arith.subf %108, %109 : vector<8x128xf32>
    %111 = arith.subf %84, %95 : vector<8x128xf32>
    %cst_50 = arith.constant 5.000000e+02 : f32
    %112 = vector.broadcast %cst_50 : f32 to vector<8x128xf32>
    %113 = arith.mulf %112, %111 : vector<8x128xf32>
    %114 = arith.subf %95, %106 : vector<8x128xf32>
    %cst_51 = arith.constant 2.000000e+02 : f32
    %115 = vector.broadcast %cst_51 : f32 to vector<8x128xf32>
    %116 = arith.mulf %115, %114 : vector<8x128xf32>
    %cst_52 = arith.constant 0.00999999977 : f32
    %117 = vector.broadcast %cst_52 : f32 to vector<8x128xf32>
    %118 = arith.mulf %110, %117 : vector<8x128xf32>
    %cst_53 = arith.constant 1.280000e+02 : f32
    %119 = vector.broadcast %cst_53 : f32 to vector<8x128xf32>
    %120 = arith.addf %113, %119 : vector<8x128xf32>
    %cst_54 = arith.constant 0.00392156886 : f32
    %121 = vector.broadcast %cst_54 : f32 to vector<8x128xf32>
    %122 = arith.mulf %120, %121 : vector<8x128xf32>
    %cst_55 = arith.constant 1.280000e+02 : f32
    %123 = vector.broadcast %cst_55 : f32 to vector<8x128xf32>
    %124 = arith.addf %116, %123 : vector<8x128xf32>
    %cst_56 = arith.constant 0.00392156886 : f32
    %125 = vector.broadcast %cst_56 : f32 to vector<8x128xf32>
    %126 = arith.mulf %124, %125 : vector<8x128xf32>
    %127 = vector.extract_strided_slice %6 {offsets = [0, 0, 0], sizes = [1, 8, 128], strides = [1, 1, 1]} : vector<3x8x128xf32> to vector<1x8x128xf32>
    %128 = vector.shape_cast %127 : vector<1x8x128xf32> to vector<8x128xf32>
    %129 = vector.extract_strided_slice %6 {offsets = [1, 0, 0], sizes = [1, 8, 128], strides = [1, 1, 1]} : vector<3x8x128xf32> to vector<1x8x128xf32>
    %130 = vector.shape_cast %129 : vector<1x8x128xf32> to vector<8x128xf32>
    %131 = vector.extract_strided_slice %6 {offsets = [2, 0, 0], sizes = [1, 8, 128], strides = [1, 1, 1]} : vector<3x8x128xf32> to vector<1x8x128xf32>
    %132 = vector.shape_cast %131 : vector<1x8x128xf32> to vector<8x128xf32>
    %cst_57 = arith.constant 4.045000e-02 : f32
    %133 = vector.broadcast %cst_57 : f32 to vector<8x128xf32>
    %134 = arith.cmpf ogt, %128, %133 : vector<8x128xf32>
    %cst_58 = arith.constant 5.500000e-02 : f32
    %135 = vector.broadcast %cst_58 : f32 to vector<8x128xf32>
    %136 = arith.addf %128, %135 : vector<8x128xf32>
    %cst_59 = arith.constant 0.947867274 : f32
    %137 = vector.broadcast %cst_59 : f32 to vector<8x128xf32>
    %138 = arith.mulf %136, %137 : vector<8x128xf32>
    %cst_60 = arith.constant 2.400000e+00 : f32
    %139 = vector.broadcast %cst_60 : f32 to vector<8x128xf32>
    %140 = math.powf %138, %139 : vector<8x128xf32>
    %cst_61 = arith.constant 0.0773993805 : f32
    %141 = vector.broadcast %cst_61 : f32 to vector<8x128xf32>
    %142 = arith.mulf %128, %141 : vector<8x128xf32>
    %143 = arith.select %134, %140, %142 : vector<8x128xi1>, vector<8x128xf32>
    %cst_62 = arith.constant 4.045000e-02 : f32
    %144 = vector.broadcast %cst_62 : f32 to vector<8x128xf32>
    %145 = arith.cmpf ogt, %130, %144 : vector<8x128xf32>
    %cst_63 = arith.constant 5.500000e-02 : f32
    %146 = vector.broadcast %cst_63 : f32 to vector<8x128xf32>
    %147 = arith.addf %130, %146 : vector<8x128xf32>
    %cst_64 = arith.constant 0.947867274 : f32
    %148 = vector.broadcast %cst_64 : f32 to vector<8x128xf32>
    %149 = arith.mulf %147, %148 : vector<8x128xf32>
    %cst_65 = arith.constant 2.400000e+00 : f32
    %150 = vector.broadcast %cst_65 : f32 to vector<8x128xf32>
    %151 = math.powf %149, %150 : vector<8x128xf32>
    %cst_66 = arith.constant 0.0773993805 : f32
    %152 = vector.broadcast %cst_66 : f32 to vector<8x128xf32>
    %153 = arith.mulf %130, %152 : vector<8x128xf32>
    %154 = arith.select %145, %151, %153 : vector<8x128xi1>, vector<8x128xf32>
    %cst_67 = arith.constant 4.045000e-02 : f32
    %155 = vector.broadcast %cst_67 : f32 to vector<8x128xf32>
    %156 = arith.cmpf ogt, %132, %155 : vector<8x128xf32>
    %cst_68 = arith.constant 5.500000e-02 : f32
    %157 = vector.broadcast %cst_68 : f32 to vector<8x128xf32>
    %158 = arith.addf %132, %157 : vector<8x128xf32>
    %cst_69 = arith.constant 0.947867274 : f32
    %159 = vector.broadcast %cst_69 : f32 to vector<8x128xf32>
    %160 = arith.mulf %158, %159 : vector<8x128xf32>
    %cst_70 = arith.constant 2.400000e+00 : f32
    %161 = vector.broadcast %cst_70 : f32 to vector<8x128xf32>
    %162 = math.powf %160, %161 : vector<8x128xf32>
    %cst_71 = arith.constant 0.0773993805 : f32
    %163 = vector.broadcast %cst_71 : f32 to vector<8x128xf32>
    %164 = arith.mulf %132, %163 : vector<8x128xf32>
    %165 = arith.select %156, %162, %164 : vector<8x128xi1>, vector<8x128xf32>
    %cst_72 = arith.constant 4.124530e-01 : f32
    %166 = vector.broadcast %cst_72 : f32 to vector<8x128xf32>
    %167 = arith.mulf %166, %143 : vector<8x128xf32>
    %cst_73 = arith.constant 3.575800e-01 : f32
    %168 = vector.broadcast %cst_73 : f32 to vector<8x128xf32>
    %169 = arith.mulf %168, %154 : vector<8x128xf32>
    %170 = arith.addf %167, %169 : vector<8x128xf32>
    %cst_74 = arith.constant 1.804230e-01 : f32
    %171 = vector.broadcast %cst_74 : f32 to vector<8x128xf32>
    %172 = arith.mulf %171, %165 : vector<8x128xf32>
    %173 = arith.addf %170, %172 : vector<8x128xf32>
    %cst_75 = arith.constant 2.126710e-01 : f32
    %174 = vector.broadcast %cst_75 : f32 to vector<8x128xf32>
    %175 = arith.mulf %174, %143 : vector<8x128xf32>
    %cst_76 = arith.constant 7.151600e-01 : f32
    %176 = vector.broadcast %cst_76 : f32 to vector<8x128xf32>
    %177 = arith.mulf %176, %154 : vector<8x128xf32>
    %178 = arith.addf %175, %177 : vector<8x128xf32>
    %cst_77 = arith.constant 7.216900e-02 : f32
    %179 = vector.broadcast %cst_77 : f32 to vector<8x128xf32>
    %180 = arith.mulf %179, %165 : vector<8x128xf32>
    %181 = arith.addf %178, %180 : vector<8x128xf32>
    %cst_78 = arith.constant 1.933400e-02 : f32
    %182 = vector.broadcast %cst_78 : f32 to vector<8x128xf32>
    %183 = arith.mulf %182, %143 : vector<8x128xf32>
    %cst_79 = arith.constant 1.191930e-01 : f32
    %184 = vector.broadcast %cst_79 : f32 to vector<8x128xf32>
    %185 = arith.mulf %184, %154 : vector<8x128xf32>
    %186 = arith.addf %183, %185 : vector<8x128xf32>
    %cst_80 = arith.constant 9.502270e-01 : f32
    %187 = vector.broadcast %cst_80 : f32 to vector<8x128xf32>
    %188 = arith.mulf %187, %165 : vector<8x128xf32>
    %189 = arith.addf %186, %188 : vector<8x128xf32>
    %cst_81 = arith.constant 1.05211103 : f32
    %190 = vector.broadcast %cst_81 : f32 to vector<8x128xf32>
    %191 = arith.mulf %173, %190 : vector<8x128xf32>
    %cst_82 = arith.constant 0.918417036 : f32
    %192 = vector.broadcast %cst_82 : f32 to vector<8x128xf32>
    %193 = arith.mulf %189, %192 : vector<8x128xf32>
    %cst_83 = arith.constant 8.856000e-03 : f32
    %194 = vector.broadcast %cst_83 : f32 to vector<8x128xf32>
    %195 = arith.maximumf %191, %194 : vector<8x128xf32>
    %cst_84 = arith.constant 0.333333343 : f32
    %196 = vector.broadcast %cst_84 : f32 to vector<8x128xf32>
    %197 = math.powf %195, %196 : vector<8x128xf32>
    %cst_85 = arith.constant 7.787000e+00 : f32
    %198 = vector.broadcast %cst_85 : f32 to vector<8x128xf32>
    %199 = arith.mulf %198, %191 : vector<8x128xf32>
    %cst_86 = arith.constant 0.137931034 : f32
    %200 = vector.broadcast %cst_86 : f32 to vector<8x128xf32>
    %201 = arith.addf %199, %200 : vector<8x128xf32>
    %cst_87 = arith.constant 8.856000e-03 : f32
    %202 = vector.broadcast %cst_87 : f32 to vector<8x128xf32>
    %203 = arith.cmpf ogt, %191, %202 : vector<8x128xf32>
    %204 = arith.select %203, %197, %201 : vector<8x128xi1>, vector<8x128xf32>
    %cst_88 = arith.constant 8.856000e-03 : f32
    %205 = vector.broadcast %cst_88 : f32 to vector<8x128xf32>
    %206 = arith.maximumf %181, %205 : vector<8x128xf32>
    %cst_89 = arith.constant 0.333333343 : f32
    %207 = vector.broadcast %cst_89 : f32 to vector<8x128xf32>
    %208 = math.powf %206, %207 : vector<8x128xf32>
    %cst_90 = arith.constant 7.787000e+00 : f32
    %209 = vector.broadcast %cst_90 : f32 to vector<8x128xf32>
    %210 = arith.mulf %209, %181 : vector<8x128xf32>
    %cst_91 = arith.constant 0.137931034 : f32
    %211 = vector.broadcast %cst_91 : f32 to vector<8x128xf32>
    %212 = arith.addf %210, %211 : vector<8x128xf32>
    %cst_92 = arith.constant 8.856000e-03 : f32
    %213 = vector.broadcast %cst_92 : f32 to vector<8x128xf32>
    %214 = arith.cmpf ogt, %181, %213 : vector<8x128xf32>
    %215 = arith.select %214, %208, %212 : vector<8x128xi1>, vector<8x128xf32>
    %cst_93 = arith.constant 8.856000e-03 : f32
    %216 = vector.broadcast %cst_93 : f32 to vector<8x128xf32>
    %217 = arith.maximumf %193, %216 : vector<8x128xf32>
    %cst_94 = arith.constant 0.333333343 : f32
    %218 = vector.broadcast %cst_94 : f32 to vector<8x128xf32>
    %219 = math.powf %217, %218 : vector<8x128xf32>
    %cst_95 = arith.constant 7.787000e+00 : f32
    %220 = vector.broadcast %cst_95 : f32 to vector<8x128xf32>
    %221 = arith.mulf %220, %193 : vector<8x128xf32>
    %cst_96 = arith.constant 0.137931034 : f32
    %222 = vector.broadcast %cst_96 : f32 to vector<8x128xf32>
    %223 = arith.addf %221, %222 : vector<8x128xf32>
    %cst_97 = arith.constant 8.856000e-03 : f32
    %224 = vector.broadcast %cst_97 : f32 to vector<8x128xf32>
    %225 = arith.cmpf ogt, %193, %224 : vector<8x128xf32>
    %226 = arith.select %225, %219, %223 : vector<8x128xi1>, vector<8x128xf32>
    %cst_98 = arith.constant 1.160000e+02 : f32
    %227 = vector.broadcast %cst_98 : f32 to vector<8x128xf32>
    %228 = arith.mulf %227, %215 : vector<8x128xf32>
    %cst_99 = arith.constant 1.600000e+01 : f32
    %229 = vector.broadcast %cst_99 : f32 to vector<8x128xf32>
    %230 = arith.subf %228, %229 : vector<8x128xf32>
    %231 = arith.subf %204, %215 : vector<8x128xf32>
    %cst_100 = arith.constant 5.000000e+02 : f32
    %232 = vector.broadcast %cst_100 : f32 to vector<8x128xf32>
    %233 = arith.mulf %232, %231 : vector<8x128xf32>
    %234 = arith.subf %215, %226 : vector<8x128xf32>
    %cst_101 = arith.constant 2.000000e+02 : f32
    %235 = vector.broadcast %cst_101 : f32 to vector<8x128xf32>
    %236 = arith.mulf %235, %234 : vector<8x128xf32>
    %cst_102 = arith.constant 0.00999999977 : f32
    %237 = vector.broadcast %cst_102 : f32 to vector<8x128xf32>
    %238 = arith.mulf %230, %237 : vector<8x128xf32>
    %cst_103 = arith.constant 1.280000e+02 : f32
    %239 = vector.broadcast %cst_103 : f32 to vector<8x128xf32>
    %240 = arith.addf %233, %239 : vector<8x128xf32>
    %cst_104 = arith.constant 0.00392156886 : f32
    %241 = vector.broadcast %cst_104 : f32 to vector<8x128xf32>
    %242 = arith.mulf %240, %241 : vector<8x128xf32>
    %cst_105 = arith.constant 1.280000e+02 : f32
    %243 = vector.broadcast %cst_105 : f32 to vector<8x128xf32>
    %244 = arith.addf %236, %243 : vector<8x128xf32>
    %cst_106 = arith.constant 0.00392156886 : f32
    %245 = vector.broadcast %cst_106 : f32 to vector<8x128xf32>
    %246 = arith.mulf %244, %245 : vector<8x128xf32>
    %c0_107 = arith.constant 0 : index
    %c0_108 = arith.constant 0 : index
    %c0_109 = arith.constant 0 : index
    %c0_110 = arith.constant 0 : index
    %247 = vector.load %arg4[%c0_107, %c0_108, %c0_109, %c0_110] : memref<1x3x8x128xf32, #tpu.memory_space<vmem>>, vector<1x1x8x128xf32>
    %248 = vector.shape_cast %247 : vector<1x1x8x128xf32> to vector<8x128xf32>
    %249 = arith.subf %118, %238 : vector<8x128xf32>
    %250 = arith.mulf %249, %249 : vector<8x128xf32>
    %251 = arith.addf %248, %250 : vector<8x128xf32>
    %c0_111 = arith.constant 0 : index
    %c0_112 = arith.constant 0 : index
    %c0_113 = arith.constant 0 : index
    %c0_114 = arith.constant 0 : index
    %252 = vector.load %arg4[%c0_111, %c0_112, %c0_113, %c0_114] : memref<1x3x8x128xf32, #tpu.memory_space<vmem>>, vector<1x1x8x128xf32>
    %253 = vector.shape_cast %252 : vector<1x1x8x128xf32> to vector<8x128xf32>
    %254 = vector.shape_cast %251 : vector<8x128xf32> to vector<1x1x8x128xf32>
    tpu.vector_store %arg4[%c0_111, %c0_112, %c0_113, %c0_114], %254 {strides = array<i32>} : memref<1x3x8x128xf32, #tpu.memory_space<vmem>>, vector<1x1x8x128xf32>,
    %c0_115 = arith.constant 0 : index
    %c1 = arith.constant 1 : index
    %c0_116 = arith.constant 0 : index
    %c0_117 = arith.constant 0 : index
    %255 = vector.load %arg4[%c0_115, %c1, %c0_116, %c0_117] : memref<1x3x8x128xf32, #tpu.memory_space<vmem>>, vector<1x1x8x128xf32>
    %256 = vector.shape_cast %255 : vector<1x1x8x128xf32> to vector<8x128xf32>
    %257 = arith.subf %122, %242 : vector<8x128xf32>
    %258 = arith.mulf %257, %257 : vector<8x128xf32>
    %259 = arith.addf %256, %258 : vector<8x128xf32>
    %c0_118 = arith.constant 0 : index
    %c1_119 = arith.constant 1 : index
    %c0_120 = arith.constant 0 : index
    %c0_121 = arith.constant 0 : index
    %260 = vector.load %arg4[%c0_118, %c1_119, %c0_120, %c0_121] : memref<1x3x8x128xf32, #tpu.memory_space<vmem>>, vector<1x1x8x128xf32>
    %261 = vector.shape_cast %260 : vector<1x1x8x128xf32> to vector<8x128xf32>
    %262 = vector.shape_cast %259 : vector<8x128xf32> to vector<1x1x8x128xf32>
    tpu.vector_store %arg4[%c0_118, %c1_119, %c0_120, %c0_121], %262 {strides = array<i32>} : memref<1x3x8x128xf32, #tpu.memory_space<vmem>>, vector<1x1x8x128xf32>,
    %c0_122 = arith.constant 0 : index
    %c2 = arith.constant 2 : index
    %c0_123 = arith.constant 0 : index
    %c0_124 = arith.constant 0 : index
    %263 = vector.load %arg4[%c0_122, %c2, %c0_123, %c0_124] : memref<1x3x8x128xf32, #tpu.memory_space<vmem>>, vector<1x1x8x128xf32>
    %264 = vector.shape_cast %263 : vector<1x1x8x128xf32> to vector<8x128xf32>
    %265 = arith.subf %126, %246 : vector<8x128xf32>
    %266 = arith.mulf %265, %265 : vector<8x128xf32>
    %267 = arith.addf %264, %266 : vector<8x128xf32>
    %c0_125 = arith.constant 0 : index
    %c2_126 = arith.constant 2 : index
    %c0_127 = arith.constant 0 : index
    %c0_128 = arith.constant 0 : index
    %268 = vector.load %arg4[%c0_125, %c2_126, %c0_127, %c0_128] : memref<1x3x8x128xf32, #tpu.memory_space<vmem>>, vector<1x1x8x128xf32>
    %269 = vector.shape_cast %268 : vector<1x1x8x128xf32> to vector<8x128xf32>
    %270 = vector.shape_cast %267 : vector<8x128xf32> to vector<1x1x8x128xf32>
    tpu.vector_store %arg4[%c0_125, %c2_126, %c0_127, %c0_128], %270 {strides = array<i32>} : memref<1x3x8x128xf32, #tpu.memory_space<vmem>>, vector<1x1x8x128xf32>,
    return
  }
  func.func @transform_0(%arg0: i32, %arg1: i32) -> (i32, i32, i32, i32) {
    %c0_i32 = arith.constant 0 : i32
    %c0_i32_0 = arith.constant 0 : i32
    %c0_i32_1 = arith.constant 0 : i32
    return %arg0, %c0_i32, %arg1, %c0_i32_0 : i32, i32, i32, i32
  }
  func.func @transform_1(%arg0: i32, %arg1: i32) -> (i32, i32, i32, i32) {
    %c0_i32 = arith.constant 0 : i32
    %c0_i32_0 = arith.constant 0 : i32
    %c0_i32_1 = arith.constant 0 : i32
    return %arg0, %c0_i32, %arg1, %c0_i32_0 : i32, i32, i32, i32
  }
  func.func @transform_2(%arg0: i32, %arg1: i32) -> (i32, i32, i32, i32) {
    %c0_i32 = arith.constant 0 : i32
    %c0_i32_0 = arith.constant 0 : i32
    %c0_i32_1 = arith.constant 0 : i32
    %c0_i32_2 = arith.constant 0 : i32
    return %arg0, %c0_i32, %c0_i32_0, %c0_i32_1 : i32, i32, i32, i32
  }
}

</mosaic_0001>

<llo_original>
// kernel: lab_loss.1
$region0: #{lab_loss.1}
  #allocation0 [shape = 'u32[]', space=smem, size = 0x4, offset = 0x4, fixed_abs, tag = 'smem constant byte address 0x4 - core index']
  #allocation1 [shape = 'u32[72,128]{1,0:T(1,128)}', space=vmem, size = 0x9000, scoped, tag = 'internal scratch']
  %s0 = inlined_call_operand.vmem [shape: f32[2,3,8,128], index: 0, kind: input, shape index: {}]
  %s1 = inlined_call_operand.vmem [shape: f32[2,3,8,128], index: 1, kind: input, shape index: {}]
  %s2 = inlined_call_operand.vmem [shape: f32[2,3,8,128], index: 2, kind: output, shape index: {}]
  %s3 = sld [smem:[#allocation0]]
  $region45: #{lab_loss.1} parent=0
    _
  %s5 = ssub.s32 1, %s3
  %s6 = scalar_select 0, %s5, %s3
  loop: start=0, step=1, limit=4
  $region2: #{lab_loss.1} parent=0 // loop_pre_header
    _
  $region3: #{lab_loss.1} parent=0 // loop_header
    %s8 = sphi 0, %s12
    %p9 = scmp.ge.s32.totalorder %s8, 4
    %s15 = sphi 0, %s27
    %s16 = sphi 0, %s23
    %s17 = sphi 0, %s15
    %s18 = sphi 0, %s16
    %s19 = sphi 0, %s17
    %s20 = sphi 0, %s18
    %s32 = sphi 0, %s34
    %s35 = sphi 0, %s32
    %s36 = sphi 0, %s35
    %s52 = sphi 0, %s36
    %s60 = sphi 0, %s62
    %s63 = sphi 0, %s60
    %s64 = sphi 0, %s63
    %s80 = sphi 0, %s64
    %s86 = sphi 0, %s88
    %s89 = sphi 0, %s86
    %s90 = sphi 0, %s89
    %s106 = sphi 0, %s90
  $region4: #{lab_loss.1} parent=0 // loop_header_branch
    %11 = sbr.rel (%p9) target = $region8
  $region5: #{lab_loss.1} parent=0 // loop_body
    %s13 = ssub.s32 %s8, 1
    %s14 = ssub.s32 %s8, 2
    %s21 = sadd.s32 1, %s16
    %p22 = scmp.ge.s32.totalorder %s21, 1
    %s23 = scalar_select %p22, 0, %s21
    %s24 = sadd.s32 1, %s15
    %s25 = scalar_select %p22, %s24, %s15
    %p26 = scmp.ge.s32.totalorder %s25, 2
    %s27 = scalar_select %p26, 0, %s25
    %s28 = ssub.s32 %s15, %s27
    %s29 = ssub.s32 %s16, %s23
    %s30 = sor.u32 %s28, %s29
    %p31 = scmp.eq.s32.totalorder %s30, 0
    %s33 = sadd.s32 %s32, 1
    %s34 = scalar_select %p31, %s32, %s33
    %p37 = pneg %p31
    %p38 = scmp.eq.s32.totalorder %s8, 1
    %p39 = por %p37, %p38
    %p40 = scmp.ne.s32.totalorder %s32, %s35
    %p41 = scmp.eq.s32.totalorder %s8, 0
    %p42 = por %p40, %p41
    %p43 = scmp.ne.s32.totalorder %s32, %s35
    %p44 = scmp.eq.s32.totalorder %s13, 1
    %p45 = por %p43, %p44
    %p46 = scmp.ne.s32.totalorder %s35, %s36
    %p47 = scmp.eq.s32.totalorder %s13, 0
    %p48 = por %p46, %p47
    %p49 = scmp.ne.s32.totalorder %s35, %s36
    %p50 = scmp.eq.s32.totalorder %s14, 1
    %p51 = por %p49, %p50
    %p53 = scmp.ne.s32.totalorder %s36, %s52
    %p54 = scmp.eq.s32.totalorder %s14, 0
    %p55 = por %p53, %p54
    %s56 = ssub.s32 %s15, %s27
    %s57 = ssub.s32 %s16, %s23
    %s58 = sor.u32 %s56, %s57
    %p59 = scmp.eq.s32.totalorder %s58, 0
    %s61 = sadd.s32 %s60, 1
    %s62 = scalar_select %p59, %s60, %s61
    %p65 = pneg %p59
    %p66 = scmp.eq.s32.totalorder %s8, 1
    %p67 = por %p65, %p66
    %p68 = scmp.ne.s32.totalorder %s60, %s63
    %p69 = scmp.eq.s32.totalorder %s8, 0
    %p70 = por %p68, %p69
    %p71 = scmp.ne.s32.totalorder %s60, %s63
    %p72 = scmp.eq.s32.totalorder %s13, 1
    %p73 = por %p71, %p72
    %p74 = scmp.ne.s32.totalorder %s63, %s64
    %p75 = scmp.eq.s32.totalorder %s13, 0
    %p76 = por %p74, %p75
    %p77 = scmp.ne.s32.totalorder %s63, %s64
    %p78 = scmp.eq.s32.totalorder %s14, 1
    %p79 = por %p77, %p78
    %p81 = scmp.ne.s32.totalorder %s64, %s80
    %p82 = scmp.eq.s32.totalorder %s14, 0
    %p83 = por %p81, %p82
    %s84 = ssub.s32 %s15, %s27
    %p85 = scmp.eq.s32.totalorder %s84, 0
    %s87 = sadd.s32 %s86, 1
    %s88 = scalar_select %p85, %s86, %s87
    %p91 = pneg %p85
    %p92 = scmp.eq.s32.totalorder %s8, 1
    %p93 = por %p91, %p92
    %p94 = scmp.ne.s32.totalorder %s86, %s89
    %p95 = scmp.eq.s32.totalorder %s8, 0
    %p96 = por %p94, %p95
    %p97 = scmp.ne.s32.totalorder %s86, %s89
    %p98 = scmp.eq.s32.totalorder %s13, 1
    %p99 = por %p97, %p98
    %p100 = scmp.ne.s32.totalorder %s89, %s90
    %p101 = scmp.eq.s32.totalorder %s13, 0
    %p102 = por %p100, %p101
    %p103 = scmp.ne.s32.totalorder %s89, %s90
    %p104 = scmp.eq.s32.totalorder %s14, 1
    %p105 = por %p103, %p104
    %p107 = scmp.ne.s32.totalorder %s90, %s106
    %p108 = scmp.eq.s32.totalorder %s14, 0
    %p109 = por %p107, %p108
    %p110 = scmp.le.s32.totalorder 1, %s8
    %p111 = scmp.lt.s32.totalorder %s8, 3
    %p112 = pnand %p110, %p111
    %p113 = pneg %p112
    // Predicated region
    $region9: #{lab_loss.1} parent=5 // pred_check
      _
    $region10: #{lab_loss.1} parent=5 // pred_check_branch
      %115 = sbr.rel (%p112) target = $region12
    $region11: #{lab_loss.1} parent=5 // pred_region
      %s116 = ssub.s32 %s8, 1
    $region12: #{lab_loss.1} parent=5 // pred_fallthru
      _
    %p117 = scmp.lt.s32.totalorder %s8, 2
    // Predicated region
    $region13: #{lab_loss.1} parent=5 // pred_check
      %p118 = pneg %p117
    $region14: #{lab_loss.1} parent=5 // pred_check_branch
      %120 = sbr.rel (%p118) target = $region16
    $region15: #{lab_loss.1} parent=5 // pred_region
      // Predicated region
      $region17: #{lab_loss.1} parent=15 // pred_check
        %p121 = pneg %p42
      $region18: #{lab_loss.1} parent=15 // pred_check_branch
        %123 = sbr.rel (%p121) target = $region20
      $region19: #{lab_loss.1} parent=15 // pred_region
        %p124 = scmp.lt.s32.totalorder %s15, 1
        %s125 = scalar_select %p124, %s15, 1
        %p126 = scmp.lt.s32.totalorder %s16, 0
        %s127 = scalar_select %p126, %s16, 0
        %s128 = smul.addr %s125, 3
        %s129 = sadd.s32 %s127, %s128
        %s130 = smul.addr %s129, 8
        %s131 = scalar_lea.vmem %s0, %s130
      $region20: #{lab_loss.1} parent=15 // pred_fallthru
        _
      // Predicated region
      $region21: #{lab_loss.1} parent=15 // pred_check
        %p132 = pneg %p70
      $region22: #{lab_loss.1} parent=15 // pred_check_branch
        %134 = sbr.rel (%p132) target = $region24
      $region23: #{lab_loss.1} parent=15 // pred_region
        %p135 = scmp.lt.s32.totalorder %s15, 1
        %s136 = scalar_select %p135, %s15, 1
        %p137 = scmp.lt.s32.totalorder %s16, 0
        %s138 = scalar_select %p137, %s16, 0
        %s139 = smul.addr %s136, 3
        %s140 = sadd.s32 %s138, %s139
        %s141 = smul.addr %s140, 8
        %s142 = scalar_lea.vmem %s1, %s141
      $region24: #{lab_loss.1} parent=15 // pred_fallthru
        _
    $region16: #{lab_loss.1} parent=5 // pred_fallthru
      _
    %p143 = scmp.le.s32.totalorder 1, %s8
    %p144 = scmp.lt.s32.totalorder %s8, 3
    %p145 = pnand %p143, %p144
    %p146 = pneg %p145
    // Predicated region
    $region25: #{lab_loss.1} parent=5 // pred_check
      _
    $region26: #{lab_loss.1} parent=5 // pred_check_branch
      %148 = sbr.rel (%p145) target = $region28
    $region27: #{lab_loss.1} parent=5 // pred_region
      %s149 = ssub.s32 %s8, 1
      %p150 = scmp.lt.s32.totalorder %s17, 1
      %s151 = scalar_select %p150, %s17, 1
      %p152 = scmp.lt.s32.totalorder %s18, 0
      %s153 = scalar_select %p152, %s18, 0
      %s154 = smul.addr %s151, 3
      %s155 = sadd.s32 %s153, %s154
      %s156 = smul.addr %s155, 8
      %s157 = scalar_lea.vmem %s0, %s156
      %p158 = pneg %p48
      %p159 = pneg %p45
      %p160 = scmp.lt.s32.totalorder %s17, 1
      %s161 = scalar_select %p160, %s17, 1
      %p162 = scmp.lt.s32.totalorder %s18, 0
      %s163 = scalar_select %p162, %s18, 0
      %s164 = smul.addr %s161, 3
      %s165 = sadd.s32 %s163, %s164
      %s166 = smul.addr %s165, 8
      %s167 = scalar_lea.vmem %s1, %s166
      %p168 = pneg %p76
      %p169 = pneg %p73
      %p170 = pneg %p102
      %p171 = pneg %p99
      %p172 = scmp.lt.s32.totalorder %s17, 1
      %s173 = scalar_select %p172, %s17, 1
      %s174 = smul.addr %s173, 3
      %s175 = smul.addr %s174, 8
      %s176 = scalar_lea.vmem %s2, %s175
      %p177 = scmp.lt.s32.totalorder %s17, 1
      %s178 = scalar_select %p177, %s17, 1
      %p179 = scmp.lt.s32.totalorder %s18, 0
      %s180 = scalar_select %p179, %s18, 0
      %s181 = smul.addr %s178, 3
      %s182 = sadd.s32 %s180, %s181
      %s183 = smul.addr %s182, 8
      %s184 = scalar_lea.vmem %s0, %s183
      %p185 = scmp.lt.s32.totalorder %s17, 1
      %s186 = scalar_select %p185, %s17, 1
      %p187 = scmp.lt.s32.totalorder %s18, 0
      %s188 = scalar_select %p187, %s18, 0
      %s189 = smul.addr %s186, 3
      %s190 = sadd.s32 %s188, %s189
      %s191 = smul.addr %s190, 8
      %s192 = scalar_lea.vmem %s1, %s191
      %p193 = scmp.lt.s32.totalorder %s17, 1
      %s194 = scalar_select %p193, %s17, 1
      %s195 = smul.addr %s194, 3
      %s196 = smul.addr %s195, 8
      %s197 = scalar_lea.vmem %s2, %s196
      %p198 = scmp.eq.s32.totalorder %s18, 0
      // Predicated region
      $region29: #{lab_loss.1} parent=27 // pred_check
        %p199 = pneg %p198
      $region30: #{lab_loss.1} parent=27 // pred_check_branch
        %201 = sbr.rel (%p199) target = $region32
      $region31: #{lab_loss.1} parent=27 // pred_region
        %202 = vst [vmem:[%s197] sm:$0xff] 0.0
        %203 = vst [vmem:[%s197 + $0x8] sm:$0xff] 0.0
        %204 = vst [vmem:[%s197 + $0x10] sm:$0xff] 0.0
      $region32: #{lab_loss.1} parent=27 // pred_fallthru
        _
      %v205 = vld [vmem:[%s184] sm:$0xff]
      %v206 = vld [vmem:[%s184 + $0x8] sm:$0xff]
      %v207 = vld [vmem:[%s184 + $0x10] sm:$0xff]
      %v208 = vld [vmem:[%s192] sm:$0xff]
      %v209 = vld [vmem:[%s192 + $0x8] sm:$0xff]
      %v210 = vld [vmem:[%s192 + $0x10] sm:$0xff]
      %vm211 = vcmp.gt.f32.partialorder %v205, 0.04045
      %v212 = vadd.f32 %v205, 0.055
      %v213 = vmul.f32 %v212, 0.9478673
      %v214 = vpow.f32 %v213, 2.4
      %v215 = vmul.f32 %v205, 0.07739938
      %v216 = vsel %vm211, %v214, %v215
      %vm217 = vcmp.gt.f32.partialorder %v206, 0.04045
      %v218 = vadd.f32 %v206, 0.055
      %v219 = vmul.f32 %v218, 0.9478673
      %v220 = vpow.f32 %v219, 2.4
      %v221 = vmul.f32 %v206, 0.07739938
      %v222 = vsel %vm217, %v220, %v221
      %vm223 = vcmp.gt.f32.partialorder %v207, 0.04045
      %v224 = vadd.f32 %v207, 0.055
      %v225 = vmul.f32 %v224, 0.9478673
      %v226 = vpow.f32 %v225, 2.4
      %v227 = vmul.f32 %v207, 0.07739938
      %v228 = vsel %vm223, %v226, %v227
      %v229 = vmul.f32 %v216, 0.412453
      %v230 = vmul.f32 %v222, 0.35758
      %v231 = vadd.f32 %v229, %v230
      %v232 = vmul.f32 %v228, 0.180423
      %v233 = vadd.f32 %v231, %v232
      %v234 = vmul.f32 %v216, 0.212671
      %v235 = vmul.f32 %v222, 0.71516
      %v236 = vadd.f32 %v234, %v235
      %v237 = vmul.f32 %v228, 0.072169
      %v238 = vadd.f32 %v236, %v237
      %v239 = vmul.f32 %v216, 0.019334
      %v240 = vmul.f32 %v222, 0.119193
      %v241 = vadd.f32 %v239, %v240
      %v242 = vmul.f32 %v228, 0.950227
      %v243 = vadd.f32 %v241, %v242
      %v244 = vmul.f32 %v233, 1.052111
      %v245 = vmul.f32 %v243, 0.91841704
      %v246 = vmax.f32 %v244, 0.008856
      %v247 = vpow.f32 %v246, 0.33333334
      %v248 = vmul.f32 %v244, 7.787
      %v249 = vadd.f32 %v248, 0.13793103
      %vm250 = vcmp.gt.f32.partialorder %v244, 0.008856
      %v251 = vsel %vm250, %v247, %v249
      %v252 = vmax.f32 %v238, 0.008856
      %v253 = vpow.f32 %v252, 0.33333334
      %v254 = vmul.f32 %v238, 7.787
      %v255 = vadd.f32 %v254, 0.13793103
      %vm256 = vcmp.gt.f32.partialorder %v238, 0.008856
      %v257 = vsel %vm256, %v253, %v255
      %v258 = vmax.f32 %v245, 0.008856
      %v259 = vpow.f32 %v258, 0.33333334
      %v260 = vmul.f32 %v245, 7.787
      %v261 = vadd.f32 %v260, 0.13793103
      %vm262 = vcmp.gt.f32.partialorder %v245, 0.008856
      %v263 = vsel %vm262, %v259, %v261
      %v264 = vmul.f32 %v257, 116.0
      %v265 = vsub.f32 %v264, 16.0
      %v266 = vsub.f32 %v251, %v257
      %v267 = vmul.f32 %v266, 500.0
      %v268 = vsub.f32 %v257, %v263
      %v269 = vmul.f32 %v268, 200.0
      %v270 = vmul.f32 %v265, 0.01
      %v271 = vadd.f32 %v267, 128.0
      %v272 = vmul.f32 %v271, 0.003921569
      %v273 = vadd.f32 %v269, 128.0
      %v274 = vmul.f32 %v273, 0.003921569
      %vm275 = vcmp.gt.f32.partialorder %v208, 0.04045
      %v276 = vadd.f32 %v208, 0.055
      %v277 = vmul.f32 %v276, 0.9478673
      %v278 = vpow.f32 %v277, 2.4
      %v279 = vmul.f32 %v208, 0.07739938
      %v280 = vsel %vm275, %v278, %v279
      %vm281 = vcmp.gt.f32.partialorder %v209, 0.04045
      %v282 = vadd.f32 %v209, 0.055
      %v283 = vmul.f32 %v282, 0.9478673
      %v284 = vpow.f32 %v283, 2.4
      %v285 = vmul.f32 %v209, 0.07739938
      %v286 = vsel %vm281, %v284, %v285
      %vm287 = vcmp.gt.f32.partialorder %v210, 0.04045
      %v288 = vadd.f32 %v210, 0.055
      %v289 = vmul.f32 %v288, 0.9478673
      %v290 = vpow.f32 %v289, 2.4
      %v291 = vmul.f32 %v210, 0.07739938
      %v292 = vsel %vm287, %v290, %v291
      %v293 = vmul.f32 %v280, 0.412453
      %v294 = vmul.f32 %v286, 0.35758
      %v295 = vadd.f32 %v293, %v294
      %v296 = vmul.f32 %v292, 0.180423
      %v297 = vadd.f32 %v295, %v296
      %v298 = vmul.f32 %v280, 0.212671
      %v299 = vmul.f32 %v286, 0.71516
      %v300 = vadd.f32 %v298, %v299
      %v301 = vmul.f32 %v292, 0.072169
      %v302 = vadd.f32 %v300, %v301
      %v303 = vmul.f32 %v280, 0.019334
      %v304 = vmul.f32 %v286, 0.119193
      %v305 = vadd.f32 %v303, %v304
      %v306 = vmul.f32 %v292, 0.950227
      %v307 = vadd.f32 %v305, %v306
      %v308 = vmul.f32 %v297, 1.052111
      %v309 = vmul.f32 %v307, 0.91841704
      %v310 = vmax.f32 %v308, 0.008856
      %v311 = vpow.f32 %v310, 0.33333334
      %v312 = vmul.f32 %v308, 7.787
      %v313 = vadd.f32 %v312, 0.13793103
      %vm314 = vcmp.gt.f32.partialorder %v308, 0.008856
      %v315 = vsel %vm314, %v311, %v313
      %v316 = vmax.f32 %v302, 0.008856
      %v317 = vpow.f32 %v316, 0.33333334
      %v318 = vmul.f32 %v302, 7.787
      %v319 = vadd.f32 %v318, 0.13793103
      %vm320 = vcmp.gt.f32.partialorder %v302, 0.008856
      %v321 = vsel %vm320, %v317, %v319
      %v322 = vmax.f32 %v309, 0.008856
      %v323 = vpow.f32 %v322, 0.33333334
      %v324 = vmul.f32 %v309, 7.787
      %v325 = vadd.f32 %v324, 0.13793103
      %vm326 = vcmp.gt.f32.partialorder %v309, 0.008856
      %v327 = vsel %vm326, %v323, %v325
      %v328 = vmul.f32 %v321, 116.0
      %v329 = vsub.f32 %v328, 16.0
      %v330 = vsub.f32 %v315, %v321
      %v331 = vmul.f32 %v330, 500.0
      %v332 = vsub.f32 %v321, %v327
      %v333 = vmul.f32 %v332, 200.0
      %v334 = vmul.f32 %v329, 0.01
      %v335 = vadd.f32 %v331, 128.0
      %v336 = vmul.f32 %v335, 0.003921569
      %v337 = vadd.f32 %v333, 128.0
      %v338 = vmul.f32 %v337, 0.003921569
      %v339 = vld [vmem:[%s197] sm:$0xff]
      %v340 = vsub.f32 %v270, %v334
      %v341 = vmul.f32 %v340, %v340
      %v342 = vadd.f32 %v339, %v341
      %343 = vst [vmem:[%s197] sm:$0xff] %v342
      %s344 = scalar_lea.vmem %s197, 8
      %v345 = vld [vmem:[%s344] sm:$0xff]
      %v346 = vsub.f32 %v272, %v336
      %v347 = vmul.f32 %v346, %v346
      %v348 = vadd.f32 %v345, %v347
      %349 = vst [vmem:[%s344] sm:$0xff] %v348
      %s350 = scalar_lea.vmem %s197, 16
      %v351 = vld [vmem:[%s350] sm:$0xff]
      %v352 = vsub.f32 %v274, %v338
      %v353 = vmul.f32 %v352, %v352
      %v354 = vadd.f32 %v351, %v353
      %355 = vst [vmem:[%s350] sm:$0xff] %v354
      %p356 = scmp.lt.s32.totalorder %s17, 1
      %s357 = scalar_select %p356, %s17, 1
      %s358 = smul.addr %s357, 3
      %s359 = smul.addr %s358, 8
      %s360 = scalar_lea.vmem %s2, %s359
      // Predicated region
      $region33: #{lab_loss.1} parent=27 // pred_check
        %p361 = pneg %p99
      $region34: #{lab_loss.1} parent=27 // pred_check_branch
        %363 = sbr.rel (%p361) target = $region36
      $region35: #{lab_loss.1} parent=27 // pred_region
        _
      $region36: #{lab_loss.1} parent=27 // pred_fallthru
        _
    $region28: #{lab_loss.1} parent=5 // pred_fallthru
      _
    %p364 = scmp.le.s32.totalorder 2, %s8
    // Predicated region
    $region37: #{lab_loss.1} parent=5 // pred_check
      %p365 = pneg %p364
    $region38: #{lab_loss.1} parent=5 // pred_check_branch
      %367 = sbr.rel (%p365) target = $region40
    $region39: #{lab_loss.1} parent=5 // pred_region
      %s368 = ssub.s32 %s8, 2
      // Predicated region
      $region41: #{lab_loss.1} parent=39 // pred_check
        %p369 = pneg %p105
      $region42: #{lab_loss.1} parent=39 // pred_check_branch
        %371 = sbr.rel (%p369) target = $region44
      $region43: #{lab_loss.1} parent=39 // pred_region
        %p372 = scmp.lt.s32.totalorder %s19, 1
        %s373 = scalar_select %p372, %s19, 1
        %s374 = smul.addr %s373, 3
        %s375 = smul.addr %s374, 8
        %s376 = scalar_lea.vmem %s2, %s375
      $region44: #{lab_loss.1} parent=39 // pred_fallthru
        _
    $region40: #{lab_loss.1} parent=5 // pred_fallthru
      _
  $region6: #{lab_loss.1} parent=0 // loop_footer
    %s12 = sadd.s32 1, %s8
  $region7: #{lab_loss.1} parent=0 // loop_footer_branch
    %7 = sbr.rel target = $region3
  $region8: #{lab_loss.1} parent=0 // loop_exit
    _

</llo_original>
